<compile_context>
chip_gen: v6e
topology: v6e:2x2x1
jax: 0.10.0
libtpu: 0.0.40
codegen_flags: <defaults>
</compile_context>

<pallas_src>
import jax
import jax.numpy as jnp
from jax.experimental import pallas as pl
from jax.experimental.pallas import tpu as pltpu


def _round_up(x: int, m: int) -> int:
    return ((x + m - 1) // m) * m


# ----------------------------------------------------------------------------
# Fused kernel:
#   pooled = sum_hw(x)                (GAP; 1/(H*W) already folded into w_fc)
#   feats  = pooled @ w_fc + b_fc     (backbone fc stand-in)
#   out    = relu(feats) @ w_head + b_head   (module_head)
# All shapes are (8,128)-aligned; padding columns/rows are zero so they do not
# perturb the valid outputs (sliced back out in the wrapper).
# ----------------------------------------------------------------------------
def head_resnet_kernel(x_ref, wfc_ref, bfc_ref, wh_ref, bh_ref, o_ref):
    # x_ref:   [BT, C_pad, HW_pad]
    # wfc_ref: [C_pad, F_pad]   (scaled by 1/(H*W) in the wrapper)
    # bfc_ref: [1, F_pad]
    # wh_ref:  [F_pad, CO_pad]
    # bh_ref:  [1, CO_pad]
    # o_ref:   [BT, CO_pad]
    pooled = jnp.sum(x_ref[...], axis=-1)                       # [BT, C_pad]
    feats = (
        jnp.dot(pooled, wfc_ref[...], preferred_element_type=jnp.float32)
        + bfc_ref[...]
    )                                                           # [BT, F_pad]
    f = jnp.maximum(feats, 0.0)                                 # ReLU
    o_ref[...] = (
        jnp.dot(f, wh_ref[...], preferred_element_type=jnp.float32)
        + bh_ref[...]
    )                                                           # [BT, CO_pad]


def head_resnet_forward(x, params):
    B, C, H, W = x.shape
    HW = H * W
    F = params["w_fc"].shape[1]        # num_ftrs (original_model.fc.out_features)
    CO = params["w_head"].shape[1]     # num_classes

    BT = 8                              # batch tile (sublane-dense)
    B_pad = _round_up(B, BT)
    C_pad = _round_up(C, 8)
    HW_pad = _round_up(HW, 128)
    F_pad = _round_up(F, 128)
    CO_pad = _round_up(CO, 128)

    # --- wrapper-side padding / layout plumbing (all zeros -> math unchanged) ---
    x3 = x.reshape(B, C, HW).astype(jnp.float32)
    x3 = jnp.pad(x3, ((0, B_pad - B), (0, C_pad - C), (0, HW_pad - HW)))

    # Fold the 1/(H*W) GAP scale into the fc weight; pad to MXU-friendly shapes.
    wfc = jnp.pad(params["w_fc"].astype(jnp.float32) * (1.0 / HW),
                  ((0, C_pad - C), (0, F_pad - F)))
    bfc = jnp.pad(params["b_fc"].astype(jnp.float32), ((0, 0), (0, F_pad - F)))
    wh = jnp.pad(params["w_head"].astype(jnp.float32),
                 ((0, F_pad - F), (0, CO_pad - CO)))
    bh = jnp.pad(params["b_head"].astype(jnp.float32), ((0, 0), (0, CO_pad - CO)))

    out_pad = pl.pallas_call(
        head_resnet_kernel,
        out_shape=jax.ShapeDtypeStruct((B_pad, CO_pad), jnp.float32),
        grid=(B_pad // BT,),
        in_specs=[
            pl.BlockSpec((BT, C_pad, HW_pad), lambda i: (i, 0, 0)),
            pl.BlockSpec((C_pad, F_pad), lambda i: (0, 0)),
            pl.BlockSpec((1, F_pad), lambda i: (0, 0)),
            pl.BlockSpec((F_pad, CO_pad), lambda i: (0, 0)),
            pl.BlockSpec((1, CO_pad), lambda i: (0, 0)),
        ],
        out_specs=pl.BlockSpec((BT, CO_pad), lambda i: (i, 0)),
        compiler_params=pltpu.CompilerParams(
            dimension_semantics=("parallel",),
        ),
    )(x3, wfc, bfc, wh, bh)

    # Strip padding back to the PyTorch contract [B, num_classes].
    return out_pad[:B, :CO]


def init_params(key, in_channels, num_ftrs, num_classes):
    k1, k2, k3, k4 = jax.random.split(key, 4)
    return {
        "w_fc": 0.1 * jax.random.normal(k1, (in_channels, num_ftrs), jnp.float32),
        "b_fc": 0.1 * jax.random.normal(k2, (1, num_ftrs), jnp.float32),
        "w_head": 0.1 * jax.random.normal(k3, (num_ftrs, num_classes), jnp.float32),
        "b_head": 0.1 * jax.random.normal(k4, (1, num_classes), jnp.float32),
    }


if __name__ == "__main__":
    B, C, H, W = 2, 4, 16, 16       # NCHW input, PyTorch convention
    NUM_FTRS = 32                   # original_model.fc.out_features
    NUM_CLASSES = 2

    key = jax.random.PRNGKey(0)
    k_x, k_p = jax.random.split(key)
    x = jax.random.normal(k_x, (B, C, H, W), jnp.float32)
    params = init_params(k_p, C, NUM_FTRS, NUM_CLASSES)

    out = head_resnet_forward(x, params)
    out = jax.block_until_ready(out)
    assert out.shape == (B, NUM_CLASSES), out.shape

    # Pure-JAX reference of the same math.
    feats_ref = (
        jnp.mean(x.reshape(B, C, H * W), axis=-1) @ params["w_fc"] + params["b_fc"]
    )
    ref = jnp.maximum(feats_ref, 0.0) @ params["w_head"] + params["b_head"]
    assert jnp.allclose(out, ref, atol=1e-5, rtol=1e-5), (
        jnp.max(jnp.abs(out - ref))
    )

    print("KERNEL_OK")
</pallas_src>

<mosaic_0001>
module attributes {stable_mosaic.version = 11 : i64} {
  func.func @head_resnet_kernel(%arg0: i32, %arg1: memref<8x8x256xf32, #tpu.memory_space<vmem>>, %arg2: memref<8x128xf32, #tpu.memory_space<vmem>>, %arg3: memref<1x128xf32, #tpu.memory_space<vmem>>, %arg4: memref<128x128xf32, #tpu.memory_space<vmem>>, %arg5: memref<1x128xf32, #tpu.memory_space<vmem>>, %arg6: memref<8x128xf32, #tpu.memory_space<vmem>>) attributes {dimension_semantics = [#tpu.dimension_semantics<parallel>], iteration_bounds = array<i64: 1>, scalar_prefetch = 0 : i64, scratch_operands = 0 : i64, tpu.core_type = #tpu.core_type<tc>, window_params = [{transform_indices = @transform_0, window_bounds = array<i64: 8, 8, 256>}, {pipeline_mode = #tpu.pipeline_mode<synchronous>, transform_indices = @transform_1, window_bounds = array<i64: 8, 128>}, {pipeline_mode = #tpu.pipeline_mode<synchronous>, transform_indices = @transform_2, window_bounds = array<i64: 1, 128>}, {pipeline_mode = #tpu.pipeline_mode<synchronous>, transform_indices = @transform_3, window_bounds = array<i64: 128, 128>}, {pipeline_mode = #tpu.pipeline_mode<synchronous>, transform_indices = @transform_4, window_bounds = array<i64: 1, 128>}, {transform_indices = @transform_5, window_bounds = array<i64: 8, 128>}]} {
    %c0 = arith.constant 0 : index
    %c0_0 = arith.constant 0 : index
    %c0_1 = arith.constant 0 : index
    %0 = vector.load %arg1[%c0, %c0_0, %c0_1] : memref<8x8x256xf32, #tpu.memory_space<vmem>>, vector<8x8x256xf32>
    %cst = arith.constant dense<0.000000e+00> : vector<8x8xf32>
    %1 = vector.multi_reduction <add>, %0, %cst [2] : vector<8x8x256xf32> to vector<8x8xf32>
    %c0_2 = arith.constant 0 : index
    %c0_3 = arith.constant 0 : index
    %2 = vector.load %arg2[%c0_2, %c0_3] : memref<8x128xf32, #tpu.memory_space<vmem>>, vector<8x128xf32>
    %cst_4 = arith.constant dense<0.000000e+00> : vector<8x128xf32>
    %3 = tpu.matmul %1, %2, %cst_4 {dimension_numbers = #tpu.dot_dimension_numbers<[1], [0], [0], [1], [0, 0, 1, 1], [], []>} : vector<8x8xf32>, vector<8x128xf32>, vector<8x128xf32> -> vector<8x128xf32>
    %c0_5 = arith.constant 0 : index
    %c0_6 = arith.constant 0 : index
    %4 = vector.load %arg3[%c0_5, %c0_6] : memref<1x128xf32, #tpu.memory_space<vmem>>, vector<1x128xf32>
    %5 = vector.broadcast %4 : vector<1x128xf32> to vector<8x128xf32>
    %6 = arith.addf %3, %5 : vector<8x128xf32>
    %cst_7 = arith.constant 0.000000e+00 : f32
    %7 = vector.broadcast %cst_7 : f32 to vector<8x128xf32>
    %8 = arith.maximumf %6, %7 : vector<8x128xf32>
    %c0_8 = arith.constant 0 : index
    %c0_9 = arith.constant 0 : index
    %9 = vector.load %arg4[%c0_8, %c0_9] : memref<128x128xf32, #tpu.memory_space<vmem>>, vector<128x128xf32>
    %cst_10 = arith.constant dense<0.000000e+00> : vector<8x128xf32>
    %10 = tpu.matmul %8, %9, %cst_10 {dimension_numbers = #tpu.dot_dimension_numbers<[1], [0], [0], [1], [0, 0, 1, 1], [], []>} : vector<8x128xf32>, vector<128x128xf32>, vector<8x128xf32> -> vector<8x128xf32>
    %c0_11 = arith.constant 0 : index
    %c0_12 = arith.constant 0 : index
    %11 = vector.load %arg5[%c0_11, %c0_12] : memref<1x128xf32, #tpu.memory_space<vmem>>, vector<1x128xf32>
    %12 = vector.broadcast %11 : vector<1x128xf32> to vector<8x128xf32>
    %13 = arith.addf %10, %12 : vector<8x128xf32>
    %c0_13 = arith.constant 0 : index
    %c0_14 = arith.constant 0 : index
    %14 = vector.load %arg6[%c0_13, %c0_14] : memref<8x128xf32, #tpu.memory_space<vmem>>, vector<8x128xf32>
    tpu.vector_store %arg6[%c0_13, %c0_14], %13 {strides = array<i32>} : memref<8x128xf32, #tpu.memory_space<vmem>>, vector<8x128xf32>,
    return
  }
  func.func @transform_0(%arg0: i32) -> (i32, i32, i32) {
    %c0_i32 = arith.constant 0 : i32
    %c0_i32_0 = arith.constant 0 : i32
    %c0_i32_1 = arith.constant 0 : i32
    return %arg0, %c0_i32, %c0_i32_0 : i32, i32, i32
  }
  func.func @transform_1(%arg0: i32) -> (i32, i32) {
    %c0_i32 = arith.constant 0 : i32
    %c0_i32_0 = arith.constant 0 : i32
    %c0_i32_1 = arith.constant 0 : i32
    return %c0_i32, %c0_i32_0 : i32, i32
  }
  func.func @transform_2(%arg0: i32) -> (i32, i32) {
    %c0_i32 = arith.constant 0 : i32
    %c0_i32_0 = arith.constant 0 : i32
    %c0_i32_1 = arith.constant 0 : i32
    return %c0_i32, %c0_i32_0 : i32, i32
  }
  func.func @transform_3(%arg0: i32) -> (i32, i32) {
    %c0_i32 = arith.constant 0 : i32
    %c0_i32_0 = arith.constant 0 : i32
    %c0_i32_1 = arith.constant 0 : i32
    return %c0_i32, %c0_i32_0 : i32, i32
  }
  func.func @transform_4(%arg0: i32) -> (i32, i32) {
    %c0_i32 = arith.constant 0 : i32
    %c0_i32_0 = arith.constant 0 : i32
    %c0_i32_1 = arith.constant 0 : i32
    return %c0_i32, %c0_i32_0 : i32, i32
  }
  func.func @transform_5(%arg0: i32) -> (i32, i32) {
    %c0_i32 = arith.constant 0 : i32
    %c0_i32_0 = arith.constant 0 : i32
    return %arg0, %c0_i32 : i32, i32
  }
}

</mosaic_0001>

<llo_original>
// kernel: tpu_custom_call.1
$region0: #{tpu_custom_call.1}
  #allocation0 [shape = 'u32[]', space=smem, size = 0x4, offset = 0x4, fixed_abs, tag = 'smem constant byte address 0x4 - core index']
  #allocation1 [shape = 'u32[144,128]{1,0:T(1,128)}', space=vmem, size = 0x12000, scoped, tag = 'internal scratch']
  %s0 = inlined_call_operand.hbm [shape: f32[8,8,256], index: 0, kind: input, shape index: {}]
  %s1 = inlined_call_operand.hbm [shape: f32[8,128], index: 1, kind: input, shape index: {}]
  %s2 = inlined_call_operand.vmem [shape: f32[1,128], index: 2, kind: input, shape index: {}]
  %s3 = inlined_call_operand.hbm [shape: f32[128,128], index: 3, kind: input, shape index: {}]
  %s4 = inlined_call_operand.vmem [shape: f32[1,128], index: 4, kind: input, shape index: {}]
  %s5 = inlined_call_operand.hbm [shape: f32[8,128], index: 5, kind: output, shape index: {}]
  %s6 = sld [smem:[#allocation0]]
  $region42: #{tpu_custom_call.1} parent=0
    _
  %s8 = ssub.s32 1, %s6
  %s9 = scalar_select 0, %s8, %s6
  $region1: #{tpu_custom_call.1} parent=0
    #allocation2 [shape = 'u8[65536]{0}', space=vmem, size = 0x10000, scoped, tag = 'input window, operand 0, single buffered']
    #allocation3 [shape = 's32[1]{0}', space=sflag, size = 0x4, scoped, tag = 'scoped memory for tpu_custom_call.1']
    #allocation4 [shape = 's32[1]{0}', space=sflag, size = 0x4, scoped, tag = 'scoped memory for tpu_custom_call.1']
    #allocation5 [shape = 'u8[4096]{0}', space=vmem, size = 0x1000, scoped, tag = 'input window, operand 1, single buffered']
    #allocation6 [shape = 's32[1]{0}', space=sflag, size = 0x4, scoped, tag = 'scoped memory for tpu_custom_call.1']
    #allocation7 [shape = 'u8[65536]{0}', space=vmem, size = 0x10000, scoped, tag = 'input window, operand 3, single buffered']
    #allocation8 [shape = 'u8[4096]{0}', space=vmem, size = 0x1000, scoped, tag = 'output window, operand 0, single buffered']
    %10 = vsyncpa [#allocation3], 0
    %11 = vsyncpa [#allocation6], 0
    %12 = vsyncpa [#allocation4], 0
    // Predicated region
    $region2: #{tpu_custom_call.1} parent=1 // pred_check
      _
    $region3: #{tpu_custom_call.1} parent=1 // pred_check_branch
      %14 = sbr.rel (0) target = $region5
    $region4: #{tpu_custom_call.1} parent=1 // pred_region
      %s16 = ssub.s32 2048, 2048
      %17 = vsyncadd [#allocation3], %s16
      %s18 = sshll.u32 [#allocation2], 4
      %s19 = int_to_ptr.vmem [resolvable:$true] %s18
      %24 = dma.hbm_to_vmem [thread:$0]  %s0, 2048, %s19, [#allocation3], 256, 256, 16
    $region5: #{tpu_custom_call.1} parent=1 // pred_fallthru
      _
    // Predicated region
    $region6: #{tpu_custom_call.1} parent=1 // pred_check
      _
    $region7: #{tpu_custom_call.1} parent=1 // pred_check_branch
      %26 = sbr.rel (0) target = $region9
    $region8: #{tpu_custom_call.1} parent=1 // pred_region
      %s28 = ssub.s32 128, 128
      %29 = vsyncadd [#allocation6], %s28
      %s31 = sshll.u32 [#allocation5], 4
      %s32 = int_to_ptr.vmem [resolvable:$true] %s31
      %34 = dma.hbm_to_vmem [thread:$0]  %s1, 128, %s32, [#allocation6]
    $region9: #{tpu_custom_call.1} parent=1 // pred_fallthru
      _
    // Predicated region
    $region10: #{tpu_custom_call.1} parent=1 // pred_check
      _
    $region11: #{tpu_custom_call.1} parent=1 // pred_check_branch
      %36 = sbr.rel (0) target = $region13
    $region12: #{tpu_custom_call.1} parent=1 // pred_region
      _
    $region13: #{tpu_custom_call.1} parent=1 // pred_fallthru
      _
    // Predicated region
    $region14: #{tpu_custom_call.1} parent=1 // pred_check
      _
    $region15: #{tpu_custom_call.1} parent=1 // pred_check_branch
      %38 = sbr.rel (0) target = $region17
    $region16: #{tpu_custom_call.1} parent=1 // pred_region
      %s40 = ssub.s32 2048, 2048
      %41 = vsyncadd [#allocation6], %s40
      %s42 = sshll.u32 [#allocation7], 4
      %s43 = int_to_ptr.vmem [resolvable:$true] %s42
      %48 = dma.hbm_to_vmem [thread:$0]  %s3, 2048, %s43, [#allocation6], 128, 128, 8
    $region17: #{tpu_custom_call.1} parent=1 // pred_fallthru
      _
    // Predicated region
    $region18: #{tpu_custom_call.1} parent=1 // pred_check
      _
    $region19: #{tpu_custom_call.1} parent=1 // pred_check_branch
      %50 = sbr.rel (0) target = $region21
    $region20: #{tpu_custom_call.1} parent=1 // pred_region
      _
    $region21: #{tpu_custom_call.1} parent=1 // pred_fallthru
      _
    // Predicated region
    $region22: #{tpu_custom_call.1} parent=1 // pred_check
      _
    $region23: #{tpu_custom_call.1} parent=1 // pred_check_branch
      %52 = sbr.rel (0) target = $region25
    $region24: #{tpu_custom_call.1} parent=1 // pred_region
      %53 = dma.done [#allocation3], 2048
    $region25: #{tpu_custom_call.1} parent=1 // pred_fallthru
      _
    // Predicated region
    $region26: #{tpu_custom_call.1} parent=1 // pred_check
      _
    $region27: #{tpu_custom_call.1} parent=1 // pred_check_branch
      %55 = sbr.rel (0) target = $region29
    $region28: #{tpu_custom_call.1} parent=1 // pred_region
      %56 = dma.done [#allocation6], 128
    $region29: #{tpu_custom_call.1} parent=1 // pred_fallthru
      _
    // Predicated region
    $region30: #{tpu_custom_call.1} parent=1 // pred_check
      _
    $region31: #{tpu_custom_call.1} parent=1 // pred_check_branch
      %58 = sbr.rel (0) target = $region33
    $region32: #{tpu_custom_call.1} parent=1 // pred_region
      %59 = dma.done [#allocation6], 2048
    $region33: #{tpu_custom_call.1} parent=1 // pred_fallthru
      _
    %v60 = vld [vmem:[#allocation2] sm:$0xff]
    %v61 = vld [vmem:[#allocation2 + $0x8] sm:$0xff]
    %v62 = vld [vmem:[#allocation2 + $0x10] sm:$0xff]
    %v63 = vld [vmem:[#allocation2 + $0x18] sm:$0xff]
    %v64 = vld [vmem:[#allocation2 + $0x20] sm:$0xff]
    %v65 = vld [vmem:[#allocation2 + $0x28] sm:$0xff]
    %v66 = vld [vmem:[#allocation2 + $0x30] sm:$0xff]
    %v67 = vld [vmem:[#allocation2 + $0x38] sm:$0xff]
    %v68 = vld [vmem:[#allocation2 + $0x40] sm:$0xff]
    %v69 = vld [vmem:[#allocation2 + $0x48] sm:$0xff]
    %v70 = vld [vmem:[#allocation2 + $0x50] sm:$0xff]
    %v71 = vld [vmem:[#allocation2 + $0x58] sm:$0xff]
    %v72 = vld [vmem:[#allocation2 + $0x60] sm:$0xff]
    %v73 = vld [vmem:[#allocation2 + $0x68] sm:$0xff]
    %v74 = vld [vmem:[#allocation2 + $0x70] sm:$0xff]
    %v75 = vld [vmem:[#allocation2 + $0x78] sm:$0xff]
    %v76 = vadd.f32 %v60, %v61
    %77 = vadd.xlane.f32.xlu0 %v76
    %v78 = vpop.xlane.xlu0 %77
    %v79 = vadd.f32 %v62, %v63
    %80 = vadd.xlane.f32.xlu0 %v79
    %v81 = vpop.xlane.xlu0 %80
    %v82 = vadd.f32 %v64, %v65
    %83 = vadd.xlane.f32.xlu0 %v82
    %v84 = vpop.xlane.xlu0 %83
    %v85 = vadd.f32 %v66, %v67
    %86 = vadd.xlane.f32.xlu0 %v85
    %v87 = vpop.xlane.xlu0 %86
    %v88 = vadd.f32 %v68, %v69
    %89 = vadd.xlane.f32.xlu0 %v88
    %v90 = vpop.xlane.xlu0 %89
    %v91 = vadd.f32 %v70, %v71
    %92 = vadd.xlane.f32.xlu0 %v91
    %v93 = vpop.xlane.xlu0 %92
    %v94 = vadd.f32 %v72, %v73
    %95 = vadd.xlane.f32.xlu0 %v94
    %v96 = vpop.xlane.xlu0 %95
    %v97 = vadd.f32 %v74, %v75
    %98 = vadd.xlane.f32.xlu0 %v97
    %v99 = vpop.xlane.xlu0 %98
    %v100 = vld [vmem:[#allocation5] sm:$0xff]
    %v101 = vld [vmem:[%s2] sm:$0x1]
    %v103 = vlaneseq
    %v104 = vshrl.u32 %v103, 7
    %v105 = vsub.s32 0, %v104
    %v106 = vrot.slane %v101, %v105
    %v116 = vlaneseq
    %v117 = vand.u32 %v116, 127
    %v118 = vlaneseq
    %v119 = vshrl.u32 %v118, 7
    %v120 = vsub.s32 %v117, %v119
    %v121 = vrot.slane %v78, %v120
    %v122 = vlaneseq
    %v123 = vshrl.u32 %v122, 7
    %v124 = vsub.s32 %v117, %v123
    %v125 = vrot.slane %v81, %v124
    %v126 = vlaneseq
    %v127 = vshrl.u32 %v126, 7
    %v128 = vsub.s32 %v117, %v127
    %v129 = vrot.slane %v84, %v128
    %v130 = vlaneseq
    %v131 = vshrl.u32 %v130, 7
    %v132 = vsub.s32 %v117, %v131
    %v133 = vrot.slane %v87, %v132
    %v134 = vlaneseq
    %v135 = vshrl.u32 %v134, 7
    %v136 = vsub.s32 %v117, %v135
    %v137 = vrot.slane %v90, %v136
    %v138 = vlaneseq
    %v139 = vshrl.u32 %v138, 7
    %v140 = vsub.s32 %v117, %v139
    %v141 = vrot.slane %v93, %v140
    %v142 = vlaneseq
    %v143 = vshrl.u32 %v142, 7
    %v144 = vsub.s32 %v117, %v143
    %v145 = vrot.slane %v96, %v144
    %v146 = vlaneseq
    %v147 = vshrl.u32 %v146, 7
    %v148 = vsub.s32 %v117, %v147
    %v149 = vrot.slane %v99, %v148
    %vm150 = vcmask 1041409
    %v151 = vsel %vm150, %v125, %v121
    %vm152 = vcmask 1042434
    %v153 = vsel %vm152, %v129, %v151
    %vm154 = vcmask 1043459
    %v155 = vsel %vm154, %v133, %v153
    %vm156 = vcmask 1044484
    %v157 = vsel %vm156, %v137, %v155
    %vm158 = vcmask 1045509
    %v159 = vsel %vm158, %v141, %v157
    %vm160 = vcmask 1046534
    %v161 = vsel %vm160, %v145, %v159
    %vm162 = vcmask 1047559
    %v163 = vsel %vm162, %v149, %v161
    %vm164 = vcmask 64512
    %v165 = vsel %vm164, %v163, 0
    %167 = vmatprep.subr.mxu0 0.0
    %168 = vmatpush1.msra.mxu0 0.0
    %169 = vmatprep.subr.mxu0 0.0
    %170 = vmatpush1.msra.mxu0 0.0
    %171 = vmatprep.subr.mxu0 0.0
    %172 = vmatpush1.msra.mxu0 0.0
    %173 = vmatprep.subr.mxu0 0.0
    %174 = vmatpush1.msra.mxu0 0.0
    %175 = vmatprep.subr.mxu0 0.0
    %176 = vmatpush1.msra.mxu0 0.0
    %177 = vmatprep.subr.mxu0 0.0
    %178 = vmatpush1.msra.mxu0 0.0
    %179 = vmatprep.subr.mxu0 0.0
    %180 = vmatpush1.msra.mxu0 0.0
    %181 = vmatprep.subr.mxu0 0.0
    %182 = vmatpush1.msra.mxu0 0.0
    %183 = vmatprep.subr.mxu0 0.0
    %184 = vmatpush1.msra.mxu0 0.0
    %185 = vmatprep.subr.mxu0 0.0
    %186 = vmatpush1.msra.mxu0 0.0
    %187 = vmatprep.subr.mxu0 0.0
    %188 = vmatpush1.msra.mxu0 0.0
    %189 = vmatprep.subr.mxu0 0.0
    %190 = vmatpush1.msra.mxu0 0.0
    %191 = vmatprep.subr.mxu0 0.0
    %192 = vmatpush1.msra.mxu0 0.0
    %193 = vmatprep.subr.mxu0 0.0
    %194 = vmatpush1.msra.mxu0 0.0
    %195 = vmatprep.subr.mxu0 0.0
    %196 = vmatpush1.msra.mxu0 0.0
    %197 = vmatprep.subr.mxu0 0.0
    %198 = vmatpush1.msra.mxu0 %v100
    %199 = vmatprep.subr.mxu0 0.0
    %200 = vmatpush2.msra.mxu0 0.0
    %201 = vmatprep.subr.mxu0 0.0
    %202 = vmatpush2.msra.mxu0 0.0
    %203 = vmatprep.subr.mxu0 0.0
    %204 = vmatpush2.msra.mxu0 0.0
    %205 = vmatprep.subr.mxu0 0.0
    %206 = vmatpush2.msra.mxu0 0.0
    %207 = vmatprep.subr.mxu0 0.0
    %208 = vmatpush2.msra.mxu0 0.0
    %209 = vmatprep.subr.mxu0 0.0
    %210 = vmatpush2.msra.mxu0 0.0
    %211 = vmatprep.subr.mxu0 0.0
    %212 = vmatpush2.msra.mxu0 0.0
    %213 = vmatprep.subr.mxu0 0.0
    %214 = vmatpush2.msra.mxu0 0.0
    %215 = vmatprep.subr.mxu0 0.0
    %216 = vmatpush2.msra.mxu0 0.0
    %217 = vmatprep.subr.mxu0 0.0
    %218 = vmatpush2.msra.mxu0 0.0
    %219 = vmatprep.subr.mxu0 0.0
    %220 = vmatpush2.msra.mxu0 0.0
    %221 = vmatprep.subr.mxu0 0.0
    %222 = vmatpush2.msra.mxu0 0.0
    %223 = vmatprep.subr.mxu0 0.0
    %224 = vmatpush2.msra.mxu0 0.0
    %225 = vmatprep.subr.mxu0 0.0
    %226 = vmatpush2.msra.mxu0 0.0
    %227 = vmatprep.subr.mxu0 0.0
    %228 = vmatpush2.msra.mxu0 0.0
    %229 = vmatprep.subr.mxu0 0.0
    %230 = vmatpush2.msra.mxu0 0.0
    %231 = vmatprep.mubr.f32.mxu0 0.0
    %232 = vmatmul.mubr.f32.gmra.mxu0 %v165
    %v233 = vpop.f32.mrf.mxu0
    %v234 = vadd.f32 %v106, %v233
    %v235 = vpop.f32.mrf.mxu0
    %236 = vdwg.mxu0
    %v237 = vmax.f32 %v234, 0.0
    %v238 = vld [vmem:[#allocation7] sm:$0xff]
    %v239 = vld [vmem:[#allocation7 + $0x8] sm:$0xff]
    %v240 = vld [vmem:[#allocation7 + $0x10] sm:$0xff]
    %v241 = vld [vmem:[#allocation7 + $0x18] sm:$0xff]
    %v242 = vld [vmem:[#allocation7 + $0x20] sm:$0xff]
    %v243 = vld [vmem:[#allocation7 + $0x28] sm:$0xff]
    %v244 = vld [vmem:[#allocation7 + $0x30] sm:$0xff]
    %v245 = vld [vmem:[#allocation7 + $0x38] sm:$0xff]
    %v246 = vld [vmem:[#allocation7 + $0x40] sm:$0xff]
    %v247 = vld [vmem:[#allocation7 + $0x48] sm:$0xff]
    %v248 = vld [vmem:[#allocation7 + $0x50] sm:$0xff]
    %v249 = vld [vmem:[#allocation7 + $0x58] sm:$0xff]
    %v250 = vld [vmem:[#allocation7 + $0x60] sm:$0xff]
    %v251 = vld [vmem:[#allocation7 + $0x68] sm:$0xff]
    %v252 = vld [vmem:[#allocation7 + $0x70] sm:$0xff]
    %v253 = vld [vmem:[#allocation7 + $0x78] sm:$0xff]
    %v254 = vld [vmem:[%s4] sm:$0x1]
    %v256 = vlaneseq
    %v257 = vshrl.u32 %v256, 7
    %v258 = vsub.s32 0, %v257
    %v259 = vrot.slane %v254, %v258
    %261 = vmatprep.subr.mxu0 0.0
    %262 = vmatpush1.msra.mxu0 %v253
    %263 = vmatprep.subr.mxu0 0.0
    %264 = vmatpush1.msra.mxu0 %v252
    %265 = vmatprep.subr.mxu0 0.0
    %266 = vmatpush1.msra.mxu0 %v251
    %267 = vmatprep.subr.mxu0 0.0
    %268 = vmatpush1.msra.mxu0 %v250
    %269 = vmatprep.subr.mxu0 0.0
    %270 = vmatpush1.msra.mxu0 %v249
    %271 = vmatprep.subr.mxu0 0.0
    %272 = vmatpush1.msra.mxu0 %v248
    %273 = vmatprep.subr.mxu0 0.0
    %274 = vmatpush1.msra.mxu0 %v247
    %275 = vmatprep.subr.mxu0 0.0
    %276 = vmatpush1.msra.mxu0 %v246
    %277 = vmatprep.subr.mxu0 0.0
    %278 = vmatpush1.msra.mxu0 %v245
    %279 = vmatprep.subr.mxu0 0.0
    %280 = vmatpush1.msra.mxu0 %v244
    %281 = vmatprep.subr.mxu0 0.0
    %282 = vmatpush1.msra.mxu0 %v243
    %283 = vmatprep.subr.mxu0 0.0
    %284 = vmatpush1.msra.mxu0 %v242
    %285 = vmatprep.subr.mxu0 0.0
    %286 = vmatpush1.msra.mxu0 %v241
    %287 = vmatprep.subr.mxu0 0.0
    %288 = vmatpush1.msra.mxu0 %v240
    %289 = vmatprep.subr.mxu0 0.0
    %290 = vmatpush1.msra.mxu0 %v239
    %291 = vmatprep.subr.mxu0 0.0
    %292 = vmatpush1.msra.mxu0 %v238
    %293 = vmatprep.subr.mxu0 0.0
    %294 = vmatpush2.msra.mxu0 0.0
    %295 = vmatprep.subr.mxu0 0.0
    %296 = vmatpush2.msra.mxu0 0.0
    %297 = vmatprep.subr.mxu0 0.0
    %298 = vmatpush2.msra.mxu0 0.0
    %299 = vmatprep.subr.mxu0 0.0
    %300 = vmatpush2.msra.mxu0 0.0
    %301 = vmatprep.subr.mxu0 0.0
    %302 = vmatpush2.msra.mxu0 0.0
    %303 = vmatprep.subr.mxu0 0.0
    %304 = vmatpush2.msra.mxu0 0.0
    %305 = vmatprep.subr.mxu0 0.0
    %306 = vmatpush2.msra.mxu0 0.0
    %307 = vmatprep.subr.mxu0 0.0
    %308 = vmatpush2.msra.mxu0 0.0
    %309 = vmatprep.subr.mxu0 0.0
    %310 = vmatpush2.msra.mxu0 0.0
    %311 = vmatprep.subr.mxu0 0.0
    %312 = vmatpush2.msra.mxu0 0.0
    %313 = vmatprep.subr.mxu0 0.0
    %314 = vmatpush2.msra.mxu0 0.0
    %315 = vmatprep.subr.mxu0 0.0
    %316 = vmatpush2.msra.mxu0 0.0
    %317 = vmatprep.subr.mxu0 0.0
    %318 = vmatpush2.msra.mxu0 0.0
    %319 = vmatprep.subr.mxu0 0.0
    %320 = vmatpush2.msra.mxu0 0.0
    %321 = vmatprep.subr.mxu0 0.0
    %322 = vmatpush2.msra.mxu0 0.0
    %323 = vmatprep.subr.mxu0 0.0
    %324 = vmatpush2.msra.mxu0 0.0
    %325 = vmatprep.mubr.f32.mxu0 0.0
    %326 = vmatmul.mubr.f32.gmra.mxu0 %v237
    %v327 = vpop.f32.mrf.mxu0
    %v328 = vadd.f32 %v259, %v327
    %v329 = vpop.f32.mrf.mxu0
    %330 = vdwg.mxu0
    %331 = vst [vmem:[#allocation8] sm:$0xff] %v328
    // Predicated region
    $region34: #{tpu_custom_call.1} parent=1 // pred_check
      _
    $region35: #{tpu_custom_call.1} parent=1 // pred_check_branch
      %333 = sbr.rel (0) target = $region37
    $region36: #{tpu_custom_call.1} parent=1 // pred_region
      %s335 = ssub.s32 128, 128
      %336 = vsyncadd [#allocation4], %s335
      %s338 = sshll.u32 [#allocation8], 4
      %s339 = int_to_ptr.vmem [resolvable:$true] %s338
      %341 = dma.vmem_to_hbm [thread:$0]  %s339, 128, %s5, [#allocation4]
    $region37: #{tpu_custom_call.1} parent=1 // pred_fallthru
      _
    // Predicated region
    $region38: #{tpu_custom_call.1} parent=1 // pred_check
      _
    $region39: #{tpu_custom_call.1} parent=1 // pred_check_branch
      %343 = sbr.rel (0) target = $region41
    $region40: #{tpu_custom_call.1} parent=1 // pred_region
      %344 = dma.done [#allocation4], 128
    $region41: #{tpu_custom_call.1} parent=1 // pred_fallthru
      _
    %345 = vsyncpa [#allocation3], 1
    %346 = vsyncpa [#allocation6], 1
    %347 = vsyncpa [#allocation4], 1

</llo_original>
